<compile_context>
chip_gen: v7x
topology: tpu7x:2x2x1
jax: 0.10.0
libtpu: 0.0.40
codegen_flags: <defaults>
</compile_context>

<pallas_src>
import functools

import jax
import jax.numpy as jnp
from jax import lax
from jax.experimental import pallas as pl
from jax.experimental.pallas import tpu as pltpu


def _round_up(c, m=8):
    return -(-c // m) * m


def _lsn_init_kernel(mask_ref, x_ref, wa0_ref, ba0_ref, wa1_ref, ba1_ref,
                     wa2_ref, ba2_ref, wb_ref, bb_ref, o1_ref, o2_ref, *, W):
    """One grid step: x_ref (Cp_in, L) -> o1_ref (C1p, L), o2_ref (C2p, L).

    L = Nb * H * W (batch folded onto the lane axis).  Masks zero every tap
    that falls into the conv zero-padding, which also covers any roll wrap
    across image boundaries within the folded lane axis.
    """
    L = x_ref.shape[-1]
    masks = mask_ref[...]                                  # (8, L) f32, resident

    # Tap order matches the (kh, kw) ordering of the folded weight columns.
    taps = []
    mi = 0
    for dh in (-1, 0, 1):
        for dw in (-1, 0, 1):
            if dh == 0 and dw == 0:
                taps.append((0, None))
            else:
                taps.append((dh * W + dw, mi))
                mi += 1

    def conv3x3(a, w_ref, b_ref):
        # a: (Cp, L) f32.  w_ref: (Cout, 9*Cp) bf16.  b_ref: (Cout, 1) f32.
        parts = []
        for shift, m in taps:
            s = a if shift == 0 else pltpu.roll(a, shift=(-shift) % L, axis=1)
            if m is not None:
                s = s * masks[m:m + 1]                     # f32 VPU mask
            parts.append(s)
        patches = jnp.concatenate(parts, axis=0)           # (9*Cp, L), 8-row slabs
        y = jnp.dot(w_ref[...], patches.astype(jnp.bfloat16),
                    preferred_element_type=jnp.float32)    # bf16 MXU, f32 acc
        return y + b_ref[...]

    def conv1x1(a, w_ref, b_ref):
        y = jnp.dot(w_ref[...], a.astype(jnp.bfloat16),
                    preferred_element_type=jnp.float32)
        return y + b_ref[...]

    x = x_ref[...]
    h = jnp.maximum(conv3x3(x, wa0_ref, ba0_ref), 0.0)      # part_a[0]
    h = jnp.maximum(conv1x1(h, wa1_ref, ba1_ref), 0.0)      # part_a[1]
    out1 = jnp.maximum(conv3x3(h, wa2_ref, ba2_ref), 0.0)   # part_a[2]
    out2 = conv1x1(out1, wb_ref, bb_ref)                    # part_b (no relu)
    o1_ref[...] = out1.astype(o1_ref.dtype)
    o2_ref[...] = out2.astype(o2_ref.dtype)


def _fold_weight_padded(w, scale, cin_pad, cout_pad):
    """HWIO conv weight (KH,KW,Cin,Cout) + folded-BN scale ->
    bf16 (cout_pad, KH*KW*cin_pad) with zero-padded channel dims."""
    KH, KW, Cin, Cout = w.shape
    wf = w * scale[None, None, None, :]                     # fold BN scale (f32)
    wf = jnp.pad(wf, ((0, 0), (0, 0),
                      (0, cin_pad - Cin), (0, cout_pad - Cout)))
    wm = jnp.transpose(wf, (3, 0, 1, 2)).reshape(cout_pad, KH * KW * cin_pad)
    return wm.astype(jnp.bfloat16)


def _pad_bias(bias, cout_pad):
    b = jnp.pad(bias, (0, cout_pad - bias.shape[0]))
    return b[:, None].astype(jnp.float32)                   # (cout_pad, 1)


def _build_masks(Nb, H, W):
    """(8, Nb*H*W) {0,1} f32 validity masks for the 8 non-center 3x3 taps,
    periodic in H*W so they are valid for batch folded onto lanes."""
    L = Nb * H * W
    flat = jnp.arange(L, dtype=jnp.int32)
    pix = flat % (H * W)
    row = pix // W
    col = pix % W
    rows = []
    for dh in (-1, 0, 1):
        for dw in (-1, 0, 1):
            if dh == 0 and dw == 0:
                continue
            ok = jnp.ones((L,), jnp.bool_)
            if dh == -1:
                ok = jnp.logical_and(ok, row >= 1)
            if dh == 1:
                ok = jnp.logical_and(ok, row <= H - 2)
            if dw == -1:
                ok = jnp.logical_and(ok, col >= 1)
            if dw == 1:
                ok = jnp.logical_and(ok, col <= W - 2)
            rows.append(ok)
    return jnp.stack(rows, axis=0).astype(jnp.float32)


def lsn_init_forward(params, x_nchw, grid_steps=None, out_dtype=jnp.float32):
    """Matches LSN_init.forward: returns (out1, out2), both NCHW."""
    N, Cin, H, W = x_nchw.shape
    HW = H * W
    if grid_steps is None:
        # 2 parallel steps keep both v7x TensorCores busy; on v5e/v6e a single
        # step is marginally better — override via grid_steps if desired.
        grid_steps = 2 if (N % 2 == 0 and N >= 2) else 1
    if N % grid_steps:
        raise ValueError("N must be divisible by grid_steps")
    Nb = N // grid_steps
    L = Nb * HW

    C1 = params["a0"][0].shape[3]
    C2 = params["b"][0].shape[3]
    Cp_in = _round_up(Cin)
    C1p = _round_up(C1)
    C2p = _round_up(C2)

    # Folded-BN weights (bf16) and biases (f32), channel dims padded to 8.
    wa0 = _fold_weight_padded(params["a0"][0], params["a0"][1], Cp_in, C1p)
    ba0 = _pad_bias(params["a0"][2], C1p)
    wa1 = _fold_weight_padded(params["a1"][0], params["a1"][1], C1p, C1p)
    ba1 = _pad_bias(params["a1"][2], C1p)
    wa2 = _fold_weight_padded(params["a2"][0], params["a2"][1], C1p, C1p)
    ba2 = _pad_bias(params["a2"][2], C1p)
    wb = _fold_weight_padded(params["b"][0], params["b"][1], C1p, C2p)
    bb = _pad_bias(params["b"][2], C2p)

    # Lay activations out C-major once: (Cp_in, N*HW), batch on the lane axis.
    x_cm = jnp.transpose(x_nchw, (1, 0, 2, 3)).reshape(Cin, N * HW)
    x_cm = jnp.pad(x_cm, ((0, Cp_in - Cin), (0, 0))).astype(jnp.float32)

    masks = _build_masks(Nb, H, W)                          # (8, L) f32

    kernel = functools.partial(_lsn_init_kernel, W=W)
    o1p, o2p = pl.pallas_call(
        kernel,
        out_shape=(jax.ShapeDtypeStruct((C1p, N * HW), out_dtype),
                   jax.ShapeDtypeStruct((C2p, N * HW), out_dtype)),
        grid=(grid_steps,),
        in_specs=[
            pl.BlockSpec((8, L), lambda g: (0, 0)),          # masks (resident)
            pl.BlockSpec((Cp_in, L), lambda g: (0, g)),      # x
            pl.BlockSpec(wa0.shape, lambda g: (0, 0)),
            pl.BlockSpec(ba0.shape, lambda g: (0, 0)),
            pl.BlockSpec(wa1.shape, lambda g: (0, 0)),
            pl.BlockSpec(ba1.shape, lambda g: (0, 0)),
            pl.BlockSpec(wa2.shape, lambda g: (0, 0)),
            pl.BlockSpec(ba2.shape, lambda g: (0, 0)),
            pl.BlockSpec(wb.shape, lambda g: (0, 0)),
            pl.BlockSpec(bb.shape, lambda g: (0, 0)),
        ],
        out_specs=[
            pl.BlockSpec((C1p, L), lambda g: (0, g)),
            pl.BlockSpec((C2p, L), lambda g: (0, g)),
        ],
        compiler_params=pltpu.CompilerParams(
            dimension_semantics=("parallel",)),
    )(masks, x_cm, wa0, ba0, wa1, ba1, wa2, ba2, wb, bb)

    # Drop padded channels, restore NCHW.
    out1 = o1p[:C1].reshape(C1, N, H, W).transpose(1, 0, 2, 3)
    out2 = o2p[:C2].reshape(C2, N, H, W).transpose(1, 0, 2, 3)
    return out1, out2


def init_lsn_params(key, in_planes, out_planes):
    """Deterministic synthetic params for LSN_init (conv weights + folded BN)."""
    inter = out_planes // 4
    specs = [
        ("a0", 3, in_planes, inter),   # ConvBlock 3x3, pad 1, relu
        ("a1", 1, inter, inter),       # ConvBlock 1x1, relu
        ("a2", 3, inter, inter),       # ConvBlock 3x3, pad 1, relu
        ("b", 1, inter, out_planes),   # ConvBlock 1x1, no relu
    ]
    params = {}
    eps = 1e-5
    for name, k, cin, cout in specs:
        key, kw_, kg, kb, km, kv = jax.random.split(key, 6)
        w = 0.1 * jax.random.normal(kw_, (k, k, cin, cout), jnp.float32)
        gamma = 1.0 + 0.1 * jax.random.normal(kg, (cout,), jnp.float32)
        beta = 0.1 * jax.random.normal(kb, (cout,), jnp.float32)
        rmean = 0.1 * jax.random.normal(km, (cout,), jnp.float32)
        rvar = 1.0 + jnp.abs(jax.random.normal(kv, (cout,), jnp.float32))
        scale = gamma / jnp.sqrt(rvar + eps)   # BN folded (eval mode)
        bias = beta - rmean * scale
        params[name] = (w, scale, bias)
    return params


def lsn_init_reference(params, x_nchw, bf16=True):
    """Pure-JAX reference (lax.conv).  With bf16=True it mirrors the kernel's
    precision scheme (bf16 operands, f32 accumulate, f32 bias/relu)."""
    x = jnp.transpose(x_nchw, (0, 2, 3, 1))

    def cb(h, p, pad, relu):
        w, s, b = p
        wf = w * s[None, None, None, :]
        if bf16:
            h = h.astype(jnp.bfloat16)
            wf = wf.astype(jnp.bfloat16)
        y = lax.conv_general_dilated(
            h, wf, (1, 1), [(pad, pad), (pad, pad)],
            dimension_numbers=("NHWC", "HWIO", "NHWC"),
            preferred_element_type=jnp.float32)
        y = y + b
        return jnp.maximum(y, 0.0) if relu else y

    h = cb(x, params["a0"], 1, True)
    h = cb(h, params["a1"], 0, True)
    o1 = cb(h, params["a2"], 1, True)
    o2 = cb(o1, params["b"], 0, False)
    return jnp.transpose(o1, (0, 3, 1, 2)), jnp.transpose(o2, (0, 3, 1, 2))


if __name__ == "__main__":
    key = jax.random.PRNGKey(0)
    kx, kp = jax.random.split(key)

    N, C, H, W = 2, 4, 16, 16          # small NCHW input (PyTorch convention)
    out_planes = 16                     # inter_planes = 4
    x = jax.random.normal(kx, (N, C, H, W), jnp.float32)
    params = init_lsn_params(kp, C, out_planes)

    out1, out2 = jax.jit(lsn_init_forward)(params, x)
    jax.block_until_ready((out1, out2))

    assert out1.shape == (N, out_planes // 4, H, W)
    assert out2.shape == (N, out_planes, H, W)

    # Primary check: reference using the same bf16-operand / f32-accumulate
    # scheme as the kernel (differences are accumulation-order only).
    r1, r2 = lsn_init_reference(params, x, bf16=True)
    assert jnp.allclose(out1, r1, atol=1e-3, rtol=1e-3), "out1 mismatch"
    assert jnp.allclose(out2, r2, atol=1e-3, rtol=1e-3), "out2 mismatch"

    # Sanity check: bf16 precision loss vs. the pure-f32 forward is bounded.
    f1, f2 = lsn_init_reference(params, x, bf16=False)
    assert jnp.allclose(out1, f1, atol=5e-2, rtol=5e-2), "out1 drift vs f32"
    assert jnp.allclose(out2, f2, atol=5e-2, rtol=5e-2), "out2 drift vs f32"

    print("KERNEL_OK")
</pallas_src>

<mosaic_0001>
module attributes {stable_mosaic.version = 11 : i64} {
  func.func @_lsn_init_kernel(%arg0: i32, %arg1: memref<8x256xf32, #tpu.memory_space<vmem>>, %arg2: memref<8x256xf32, #tpu.memory_space<vmem>>, %arg3: memref<8x72xbf16, #tpu.memory_space<vmem>>, %arg4: memref<8x1xf32, #tpu.memory_space<vmem>>, %arg5: memref<8x8xbf16, #tpu.memory_space<vmem>>, %arg6: memref<8x1xf32, #tpu.memory_space<vmem>>, %arg7: memref<8x72xbf16, #tpu.memory_space<vmem>>, %arg8: memref<8x1xf32, #tpu.memory_space<vmem>>, %arg9: memref<16x8xbf16, #tpu.memory_space<vmem>>, %arg10: memref<16x1xf32, #tpu.memory_space<vmem>>, %arg11: memref<8x256xf32, #tpu.memory_space<vmem>>, %arg12: memref<16x256xf32, #tpu.memory_space<vmem>>) attributes {dimension_semantics = [#tpu.dimension_semantics<parallel>], iteration_bounds = array<i64: 2>, scalar_prefetch = 0 : i64, scratch_operands = 0 : i64, tpu.core_type = #tpu.core_type<tc>, window_params = [{pipeline_mode = #tpu.pipeline_mode<synchronous>, transform_indices = @transform_0, window_bounds = array<i64: 8, 256>}, {transform_indices = @transform_1, window_bounds = array<i64: 8, 256>}, {pipeline_mode = #tpu.pipeline_mode<synchronous>, transform_indices = @transform_2, window_bounds = array<i64: 8, 72>}, {pipeline_mode = #tpu.pipeline_mode<synchronous>, transform_indices = @transform_3, window_bounds = array<i64: 8, 1>}, {pipeline_mode = #tpu.pipeline_mode<synchronous>, transform_indices = @transform_4, window_bounds = array<i64: 8, 8>}, {pipeline_mode = #tpu.pipeline_mode<synchronous>, transform_indices = @transform_5, window_bounds = array<i64: 8, 1>}, {pipeline_mode = #tpu.pipeline_mode<synchronous>, transform_indices = @transform_6, window_bounds = array<i64: 8, 72>}, {pipeline_mode = #tpu.pipeline_mode<synchronous>, transform_indices = @transform_7, window_bounds = array<i64: 8, 1>}, {pipeline_mode = #tpu.pipeline_mode<synchronous>, transform_indices = @transform_8, window_bounds = array<i64: 16, 8>}, {pipeline_mode = #tpu.pipeline_mode<synchronous>, transform_indices = @transform_9, window_bounds = array<i64: 16, 1>}, {transform_indices = @transform_10, window_bounds = array<i64: 8, 256>}, {transform_indices = @transform_11, window_bounds = array<i64: 16, 256>}]} {
    %c0 = arith.constant 0 : index
    %c0_0 = arith.constant 0 : index
    %0 = vector.load %arg1[%c0, %c0_0] : memref<8x256xf32, #tpu.memory_space<vmem>>, vector<8x256xf32>
    %c0_1 = arith.constant 0 : index
    %c0_2 = arith.constant 0 : index
    %1 = vector.load %arg2[%c0_1, %c0_2] : memref<8x256xf32, #tpu.memory_space<vmem>>, vector<8x256xf32>
    %c17_i32 = arith.constant 17 : i32
    %2 = tpu.dynamic_rotate %1 by %c17_i32 dim 1 : vector<8x256xf32>, i32 -> vector<8x256xf32>
    %3 = vector.extract_strided_slice %0 {offsets = [0, 0], sizes = [1, 256], strides = [1, 1]} : vector<8x256xf32> to vector<1x256xf32>
    %4 = vector.broadcast %3 : vector<1x256xf32> to vector<8x256xf32>
    %5 = arith.mulf %2, %4 : vector<8x256xf32>
    %c16_i32 = arith.constant 16 : i32
    %6 = tpu.dynamic_rotate %1 by %c16_i32 dim 1 : vector<8x256xf32>, i32 -> vector<8x256xf32>
    %7 = vector.extract_strided_slice %0 {offsets = [1, 0], sizes = [1, 256], strides = [1, 1]} : vector<8x256xf32> to vector<1x256xf32>
    %8 = vector.broadcast %7 : vector<1x256xf32> to vector<8x256xf32>
    %9 = arith.mulf %6, %8 : vector<8x256xf32>
    %c15_i32 = arith.constant 15 : i32
    %10 = tpu.dynamic_rotate %1 by %c15_i32 dim 1 : vector<8x256xf32>, i32 -> vector<8x256xf32>
    %11 = vector.extract_strided_slice %0 {offsets = [2, 0], sizes = [1, 256], strides = [1, 1]} : vector<8x256xf32> to vector<1x256xf32>
    %12 = vector.broadcast %11 : vector<1x256xf32> to vector<8x256xf32>
    %13 = arith.mulf %10, %12 : vector<8x256xf32>
    %c1_i32 = arith.constant 1 : i32
    %14 = tpu.dynamic_rotate %1 by %c1_i32 dim 1 : vector<8x256xf32>, i32 -> vector<8x256xf32>
    %15 = vector.extract_strided_slice %0 {offsets = [3, 0], sizes = [1, 256], strides = [1, 1]} : vector<8x256xf32> to vector<1x256xf32>
    %16 = vector.broadcast %15 : vector<1x256xf32> to vector<8x256xf32>
    %17 = arith.mulf %14, %16 : vector<8x256xf32>
    %c255_i32 = arith.constant 255 : i32
    %18 = tpu.dynamic_rotate %1 by %c255_i32 dim 1 : vector<8x256xf32>, i32 -> vector<8x256xf32>
    %19 = vector.extract_strided_slice %0 {offsets = [4, 0], sizes = [1, 256], strides = [1, 1]} : vector<8x256xf32> to vector<1x256xf32>
    %20 = vector.broadcast %19 : vector<1x256xf32> to vector<8x256xf32>
    %21 = arith.mulf %18, %20 : vector<8x256xf32>
    %c241_i32 = arith.constant 241 : i32
    %22 = tpu.dynamic_rotate %1 by %c241_i32 dim 1 : vector<8x256xf32>, i32 -> vector<8x256xf32>
    %23 = vector.extract_strided_slice %0 {offsets = [5, 0], sizes = [1, 256], strides = [1, 1]} : vector<8x256xf32> to vector<1x256xf32>
    %24 = vector.broadcast %23 : vector<1x256xf32> to vector<8x256xf32>
    %25 = arith.mulf %22, %24 : vector<8x256xf32>
    %c240_i32 = arith.constant 240 : i32
    %26 = tpu.dynamic_rotate %1 by %c240_i32 dim 1 : vector<8x256xf32>, i32 -> vector<8x256xf32>
    %27 = vector.extract_strided_slice %0 {offsets = [6, 0], sizes = [1, 256], strides = [1, 1]} : vector<8x256xf32> to vector<1x256xf32>
    %28 = vector.broadcast %27 : vector<1x256xf32> to vector<8x256xf32>
    %29 = arith.mulf %26, %28 : vector<8x256xf32>
    %c239_i32 = arith.constant 239 : i32
    %30 = tpu.dynamic_rotate %1 by %c239_i32 dim 1 : vector<8x256xf32>, i32 -> vector<8x256xf32>
    %31 = vector.extract_strided_slice %0 {offsets = [7, 0], sizes = [1, 256], strides = [1, 1]} : vector<8x256xf32> to vector<1x256xf32>
    %32 = vector.broadcast %31 : vector<1x256xf32> to vector<8x256xf32>
    %33 = arith.mulf %30, %32 : vector<8x256xf32>
    %34 = tpu.concatenate %5, %9, %13, %17, %1, %21, %25, %29, %33 in 0 : vector<8x256xf32>, vector<8x256xf32>, vector<8x256xf32>, vector<8x256xf32>, vector<8x256xf32>, vector<8x256xf32>, vector<8x256xf32>, vector<8x256xf32>, vector<8x256xf32> -> vector<72x256xf32>
    %c0_3 = arith.constant 0 : index
    %c0_4 = arith.constant 0 : index
    %35 = vector.load %arg3[%c0_3, %c0_4] : memref<8x72xbf16, #tpu.memory_space<vmem>>, vector<8x72xbf16>
    %36 = arith.truncf %34 : vector<72x256xf32> to vector<72x256xbf16>
    %cst = arith.constant dense<0.000000e+00> : vector<8x256xf32>
    %37 = tpu.matmul %35, %36, %cst {dimension_numbers = #tpu.dot_dimension_numbers<[1], [0], [0], [1], [0, 0, 1, 1], [], []>} : vector<8x72xbf16>, vector<72x256xbf16>, vector<8x256xf32> -> vector<8x256xf32>
    %c0_5 = arith.constant 0 : index
    %c0_6 = arith.constant 0 : index
    %38 = vector.load %arg4[%c0_5, %c0_6] : memref<8x1xf32, #tpu.memory_space<vmem>>, vector<8x1xf32>
    %39 = vector.broadcast %38 : vector<8x1xf32> to vector<8x256xf32>
    %40 = arith.addf %37, %39 : vector<8x256xf32>
    %cst_7 = arith.constant 0.000000e+00 : f32
    %41 = vector.broadcast %cst_7 : f32 to vector<8x256xf32>
    %42 = arith.maximumf %40, %41 : vector<8x256xf32>
    %c0_8 = arith.constant 0 : index
    %c0_9 = arith.constant 0 : index
    %43 = vector.load %arg5[%c0_8, %c0_9] : memref<8x8xbf16, #tpu.memory_space<vmem>>, vector<8x8xbf16>
    %44 = arith.truncf %42 : vector<8x256xf32> to vector<8x256xbf16>
    %cst_10 = arith.constant dense<0.000000e+00> : vector<8x256xf32>
    %45 = tpu.matmul %43, %44, %cst_10 {dimension_numbers = #tpu.dot_dimension_numbers<[1], [0], [0], [1], [0, 0, 1, 1], [], []>} : vector<8x8xbf16>, vector<8x256xbf16>, vector<8x256xf32> -> vector<8x256xf32>
    %c0_11 = arith.constant 0 : index
    %c0_12 = arith.constant 0 : index
    %46 = vector.load %arg6[%c0_11, %c0_12] : memref<8x1xf32, #tpu.memory_space<vmem>>, vector<8x1xf32>
    %47 = vector.broadcast %46 : vector<8x1xf32> to vector<8x256xf32>
    %48 = arith.addf %45, %47 : vector<8x256xf32>
    %cst_13 = arith.constant 0.000000e+00 : f32
    %49 = vector.broadcast %cst_13 : f32 to vector<8x256xf32>
    %50 = arith.maximumf %48, %49 : vector<8x256xf32>
    %c17_i32_14 = arith.constant 17 : i32
    %51 = tpu.dynamic_rotate %50 by %c17_i32_14 dim 1 : vector<8x256xf32>, i32 -> vector<8x256xf32>
    %52 = vector.extract_strided_slice %0 {offsets = [0, 0], sizes = [1, 256], strides = [1, 1]} : vector<8x256xf32> to vector<1x256xf32>
    %53 = vector.broadcast %52 : vector<1x256xf32> to vector<8x256xf32>
    %54 = arith.mulf %51, %53 : vector<8x256xf32>
    %c16_i32_15 = arith.constant 16 : i32
    %55 = tpu.dynamic_rotate %50 by %c16_i32_15 dim 1 : vector<8x256xf32>, i32 -> vector<8x256xf32>
    %56 = vector.extract_strided_slice %0 {offsets = [1, 0], sizes = [1, 256], strides = [1, 1]} : vector<8x256xf32> to vector<1x256xf32>
    %57 = vector.broadcast %56 : vector<1x256xf32> to vector<8x256xf32>
    %58 = arith.mulf %55, %57 : vector<8x256xf32>
    %c15_i32_16 = arith.constant 15 : i32
    %59 = tpu.dynamic_rotate %50 by %c15_i32_16 dim 1 : vector<8x256xf32>, i32 -> vector<8x256xf32>
    %60 = vector.extract_strided_slice %0 {offsets = [2, 0], sizes = [1, 256], strides = [1, 1]} : vector<8x256xf32> to vector<1x256xf32>
    %61 = vector.broadcast %60 : vector<1x256xf32> to vector<8x256xf32>
    %62 = arith.mulf %59, %61 : vector<8x256xf32>
    %c1_i32_17 = arith.constant 1 : i32
    %63 = tpu.dynamic_rotate %50 by %c1_i32_17 dim 1 : vector<8x256xf32>, i32 -> vector<8x256xf32>
    %64 = vector.extract_strided_slice %0 {offsets = [3, 0], sizes = [1, 256], strides = [1, 1]} : vector<8x256xf32> to vector<1x256xf32>
    %65 = vector.broadcast %64 : vector<1x256xf32> to vector<8x256xf32>
    %66 = arith.mulf %63, %65 : vector<8x256xf32>
    %c255_i32_18 = arith.constant 255 : i32
    %67 = tpu.dynamic_rotate %50 by %c255_i32_18 dim 1 : vector<8x256xf32>, i32 -> vector<8x256xf32>
    %68 = vector.extract_strided_slice %0 {offsets = [4, 0], sizes = [1, 256], strides = [1, 1]} : vector<8x256xf32> to vector<1x256xf32>
    %69 = vector.broadcast %68 : vector<1x256xf32> to vector<8x256xf32>
    %70 = arith.mulf %67, %69 : vector<8x256xf32>
    %c241_i32_19 = arith.constant 241 : i32
    %71 = tpu.dynamic_rotate %50 by %c241_i32_19 dim 1 : vector<8x256xf32>, i32 -> vector<8x256xf32>
    %72 = vector.extract_strided_slice %0 {offsets = [5, 0], sizes = [1, 256], strides = [1, 1]} : vector<8x256xf32> to vector<1x256xf32>
    %73 = vector.broadcast %72 : vector<1x256xf32> to vector<8x256xf32>
    %74 = arith.mulf %71, %73 : vector<8x256xf32>
    %c240_i32_20 = arith.constant 240 : i32
    %75 = tpu.dynamic_rotate %50 by %c240_i32_20 dim 1 : vector<8x256xf32>, i32 -> vector<8x256xf32>
    %76 = vector.extract_strided_slice %0 {offsets = [6, 0], sizes = [1, 256], strides = [1, 1]} : vector<8x256xf32> to vector<1x256xf32>
    %77 = vector.broadcast %76 : vector<1x256xf32> to vector<8x256xf32>
    %78 = arith.mulf %75, %77 : vector<8x256xf32>
    %c239_i32_21 = arith.constant 239 : i32
    %79 = tpu.dynamic_rotate %50 by %c239_i32_21 dim 1 : vector<8x256xf32>, i32 -> vector<8x256xf32>
    %80 = vector.extract_strided_slice %0 {offsets = [7, 0], sizes = [1, 256], strides = [1, 1]} : vector<8x256xf32> to vector<1x256xf32>
    %81 = vector.broadcast %80 : vector<1x256xf32> to vector<8x256xf32>
    %82 = arith.mulf %79, %81 : vector<8x256xf32>
    %83 = tpu.concatenate %54, %58, %62, %66, %50, %70, %74, %78, %82 in 0 : vector<8x256xf32>, vector<8x256xf32>, vector<8x256xf32>, vector<8x256xf32>, vector<8x256xf32>, vector<8x256xf32>, vector<8x256xf32>, vector<8x256xf32>, vector<8x256xf32> -> vector<72x256xf32>
    %c0_22 = arith.constant 0 : index
    %c0_23 = arith.constant 0 : index
    %84 = vector.load %arg7[%c0_22, %c0_23] : memref<8x72xbf16, #tpu.memory_space<vmem>>, vector<8x72xbf16>
    %85 = arith.truncf %83 : vector<72x256xf32> to vector<72x256xbf16>
    %cst_24 = arith.constant dense<0.000000e+00> : vector<8x256xf32>
    %86 = tpu.matmul %84, %85, %cst_24 {dimension_numbers = #tpu.dot_dimension_numbers<[1], [0], [0], [1], [0, 0, 1, 1], [], []>} : vector<8x72xbf16>, vector<72x256xbf16>, vector<8x256xf32> -> vector<8x256xf32>
    %c0_25 = arith.constant 0 : index
    %c0_26 = arith.constant 0 : index
    %87 = vector.load %arg8[%c0_25, %c0_26] : memref<8x1xf32, #tpu.memory_space<vmem>>, vector<8x1xf32>
    %88 = vector.broadcast %87 : vector<8x1xf32> to vector<8x256xf32>
    %89 = arith.addf %86, %88 : vector<8x256xf32>
    %cst_27 = arith.constant 0.000000e+00 : f32
    %90 = vector.broadcast %cst_27 : f32 to vector<8x256xf32>
    %91 = arith.maximumf %89, %90 : vector<8x256xf32>
    %c0_28 = arith.constant 0 : index
    %c0_29 = arith.constant 0 : index
    %92 = vector.load %arg9[%c0_28, %c0_29] : memref<16x8xbf16, #tpu.memory_space<vmem>>, vector<16x8xbf16>
    %93 = arith.truncf %91 : vector<8x256xf32> to vector<8x256xbf16>
    %cst_30 = arith.constant dense<0.000000e+00> : vector<16x256xf32>
    %94 = tpu.matmul %92, %93, %cst_30 {dimension_numbers = #tpu.dot_dimension_numbers<[1], [0], [0], [1], [0, 0, 1, 1], [], []>} : vector<16x8xbf16>, vector<8x256xbf16>, vector<16x256xf32> -> vector<16x256xf32>
    %c0_31 = arith.constant 0 : index
    %c0_32 = arith.constant 0 : index
    %95 = vector.load %arg10[%c0_31, %c0_32] : memref<16x1xf32, #tpu.memory_space<vmem>>, vector<16x1xf32>
    %96 = vector.broadcast %95 : vector<16x1xf32> to vector<16x256xf32>
    %97 = arith.addf %94, %96 : vector<16x256xf32>
    %c0_33 = arith.constant 0 : index
    %c0_34 = arith.constant 0 : index
    %98 = vector.load %arg11[%c0_33, %c0_34] : memref<8x256xf32, #tpu.memory_space<vmem>>, vector<8x256xf32>
    tpu.vector_store %arg11[%c0_33, %c0_34], %91 {strides = array<i32>} : memref<8x256xf32, #tpu.memory_space<vmem>>, vector<8x256xf32>,
    %c0_35 = arith.constant 0 : index
    %c0_36 = arith.constant 0 : index
    %99 = vector.load %arg12[%c0_35, %c0_36] : memref<16x256xf32, #tpu.memory_space<vmem>>, vector<16x256xf32>
    tpu.vector_store %arg12[%c0_35, %c0_36], %97 {strides = array<i32>} : memref<16x256xf32, #tpu.memory_space<vmem>>, vector<16x256xf32>,
    return
  }
  func.func @transform_0(%arg0: i32) -> (i32, i32) {
    %c0_i32 = arith.constant 0 : i32
    %c0_i32_0 = arith.constant 0 : i32
    %c0_i32_1 = arith.constant 0 : i32
    return %c0_i32, %c0_i32_0 : i32, i32
  }
  func.func @transform_1(%arg0: i32) -> (i32, i32) {
    %c0_i32 = arith.constant 0 : i32
    %c0_i32_0 = arith.constant 0 : i32
    return %c0_i32, %arg0 : i32, i32
  }
  func.func @transform_2(%arg0: i32) -> (i32, i32) {
    %c0_i32 = arith.constant 0 : i32
    %c0_i32_0 = arith.constant 0 : i32
    %c0_i32_1 = arith.constant 0 : i32
    return %c0_i32, %c0_i32_0 : i32, i32
  }
  func.func @transform_3(%arg0: i32) -> (i32, i32) {
    %c0_i32 = arith.constant 0 : i32
    %c0_i32_0 = arith.constant 0 : i32
    %c0_i32_1 = arith.constant 0 : i32
    return %c0_i32, %c0_i32_0 : i32, i32
  }
  func.func @transform_4(%arg0: i32) -> (i32, i32) {
    %c0_i32 = arith.constant 0 : i32
    %c0_i32_0 = arith.constant 0 : i32
    %c0_i32_1 = arith.constant 0 : i32
    return %c0_i32, %c0_i32_0 : i32, i32
  }
  func.func @transform_5(%arg0: i32) -> (i32, i32) {
    %c0_i32 = arith.constant 0 : i32
    %c0_i32_0 = arith.constant 0 : i32
    %c0_i32_1 = arith.constant 0 : i32
    return %c0_i32, %c0_i32_0 : i32, i32
  }
  func.func @transform_6(%arg0: i32) -> (i32, i32) {
    %c0_i32 = arith.constant 0 : i32
    %c0_i32_0 = arith.constant 0 : i32
    %c0_i32_1 = arith.constant 0 : i32
    return %c0_i32, %c0_i32_0 : i32, i32
  }
  func.func @transform_7(%arg0: i32) -> (i32, i32) {
    %c0_i32 = arith.constant 0 : i32
    %c0_i32_0 = arith.constant 0 : i32
    %c0_i32_1 = arith.constant 0 : i32
    return %c0_i32, %c0_i32_0 : i32, i32
  }
  func.func @transform_8(%arg0: i32) -> (i32, i32) {
    %c0_i32 = arith.constant 0 : i32
    %c0_i32_0 = arith.constant 0 : i32
    %c0_i32_1 = arith.constant 0 : i32
    return %c0_i32, %c0_i32_0 : i32, i32
  }
  func.func @transform_9(%arg0: i32) -> (i32, i32) {
    %c0_i32 = arith.constant 0 : i32
    %c0_i32_0 = arith.constant 0 : i32
    %c0_i32_1 = arith.constant 0 : i32
    return %c0_i32, %c0_i32_0 : i32, i32
  }
  func.func @transform_10(%arg0: i32) -> (i32, i32) {
    %c0_i32 = arith.constant 0 : i32
    %c0_i32_0 = arith.constant 0 : i32
    return %c0_i32, %arg0 : i32, i32
  }
  func.func @transform_11(%arg0: i32) -> (i32, i32) {
    %c0_i32 = arith.constant 0 : i32
    %c0_i32_0 = arith.constant 0 : i32
    return %c0_i32, %arg0 : i32, i32
  }
}

</mosaic_0001>

<llo_original>
// kernel: lsn_init_forward.1
$region0: #{lsn_init_forward.1}
  #allocation0 [shape = 'u32[]', space=smem, size = 0x4, offset = 0x4, fixed_abs, tag = 'smem constant byte address 0x4 - core index']
  #allocation1 [shape = 'u32[144,128]{1,0:T(1,128)}', space=vmem, size = 0x12000, scoped, tag = 'internal scratch']
  %s0 = inlined_call_operand.vmem [shape: f32[8,256], index: 0, kind: input, shape index: {}]
  %s1 = inlined_call_operand.vmem [shape: f32[8,512], index: 1, kind: input, shape index: {}]
  %s2 = inlined_call_operand.vmem [shape: bf16[8,72], index: 2, kind: input, shape index: {}]
  %s3 = inlined_call_operand.vmem [shape: f32[8,1], index: 3, kind: input, shape index: {}]
  %s4 = inlined_call_operand.vmem [shape: bf16[8,8], index: 4, kind: input, shape index: {}]
  %s5 = inlined_call_operand.vmem [shape: f32[8,1], index: 5, kind: input, shape index: {}]
  %s6 = inlined_call_operand.vmem [shape: bf16[8,72], index: 6, kind: input, shape index: {}]
  %s7 = inlined_call_operand.vmem [shape: f32[8,1], index: 7, kind: input, shape index: {}]
  %s8 = inlined_call_operand.vmem [shape: bf16[16,8], index: 8, kind: input, shape index: {}]
  %s9 = inlined_call_operand.vmem [shape: f32[16,1], index: 9, kind: input, shape index: {}]
  %s10 = inlined_call_operand.vmem [shape: f32[8,512], index: 10, kind: output, shape index: {0}]
  %s11 = inlined_call_operand.vmem [shape: f32[16,512], index: 11, kind: output, shape index: {1}]
  %12 = xla_tuple %s10, %s11
  %s13 = sld [smem:[#allocation0]]
  $region100: #{lsn_init_forward.1} parent=0
    _
  %s15 = ssub.s32 1, %s13
  %s16 = scalar_select 0, %s15, %s13
  $region1: #{lsn_init_forward.1} parent=0
    #allocation2 [shape = 'u8[32768]{0}', space=vmem, size = 0x8000, scoped, tag = 'output window, operand 1']
    loop: start=0, step=1, limit=4
    $region2: #{lsn_init_forward.1} parent=1 // loop_pre_header
      _
    $region3: #{lsn_init_forward.1} parent=1 // loop_header
      %s18 = sphi 0, %s22
      %p19 = scmp.ge.s32.totalorder %s18, 4
      %s26 = sphi 0, %s26
      %s28 = sphi 0, %s26
      %s29 = sphi 0, %s28
      %s43 = sphi 0, %s29
      %s49 = sphi 0, %s51
      %s52 = sphi 0, %s49
      %s53 = sphi 0, %s52
      %s69 = sphi 0, %s53
      %s73 = sphi 0, %s73
      %s75 = sphi 0, %s73
      %s76 = sphi 0, %s75
      %s90 = sphi 0, %s76
      %s94 = sphi 0, %s94
      %s96 = sphi 0, %s94
      %s97 = sphi 0, %s96
      %s111 = sphi 0, %s97
      %s115 = sphi 0, %s115
      %s117 = sphi 0, %s115
      %s118 = sphi 0, %s117
      %s132 = sphi 0, %s118
      %s136 = sphi 0, %s136
      %s138 = sphi 0, %s136
      %s139 = sphi 0, %s138
      %s153 = sphi 0, %s139
      %s157 = sphi 0, %s157
      %s159 = sphi 0, %s157
      %s160 = sphi 0, %s159
      %s174 = sphi 0, %s160
      %s178 = sphi 0, %s178
      %s180 = sphi 0, %s178
      %s181 = sphi 0, %s180
      %s195 = sphi 0, %s181
      %s199 = sphi 0, %s199
      %s201 = sphi 0, %s199
      %s202 = sphi 0, %s201
      %s216 = sphi 0, %s202
      %s220 = sphi 0, %s220
      %s222 = sphi 0, %s220
      %s223 = sphi 0, %s222
      %s237 = sphi 0, %s223
      %s243 = sphi 0, %s245
      %s246 = sphi 0, %s243
      %s247 = sphi 0, %s246
      %s263 = sphi 0, %s247
      %s269 = sphi 0, %s271
      %s272 = sphi 0, %s269
      %s273 = sphi 0, %s272
      %s289 = sphi 0, %s273
    $region4: #{lsn_init_forward.1} parent=1 // loop_header_branch
      %21 = sbr.rel (%p19) target = $region8
    $region5: #{lsn_init_forward.1} parent=1 // loop_body
      %s23 = ssub.s32 %s18, 1
      %s24 = ssub.s32 %s18, 2
      %s25 = sadd.s32 %s18, 1
      %s27 = sadd.s32 %s26, 1
      %p30 = scmp.eq.s32.totalorder %s18, 1
      %p31 = scmp.ne.s32.totalorder %s26, %s28
      %p32 = scmp.eq.s32.totalorder %s18, 0
      %p33 = por %p31, %p32
      %p34 = scmp.ne.s32.totalorder %s26, %s28
      %p35 = scmp.eq.s32.totalorder %s23, 1
      %p36 = por %p34, %p35
      %p37 = scmp.ne.s32.totalorder %s28, %s29
      %p38 = scmp.eq.s32.totalorder %s23, 0
      %p39 = por %p37, %p38
      %p40 = scmp.ne.s32.totalorder %s28, %s29
      %p41 = scmp.eq.s32.totalorder %s24, 1
      %p42 = por %p40, %p41
      %p44 = scmp.ne.s32.totalorder %s29, %s43
      %p45 = scmp.eq.s32.totalorder %s24, 0
      %p46 = por %p44, %p45
      %s47 = ssub.s32 %s18, %s25
      %p48 = scmp.eq.s32.totalorder %s47, 0
      %s50 = sadd.s32 %s49, 1
      %s51 = scalar_select %p48, %s49, %s50
      %p54 = pneg %p48
      %p55 = scmp.eq.s32.totalorder %s18, 1
      %p56 = por %p54, %p55
      %p57 = scmp.ne.s32.totalorder %s49, %s52
      %p58 = scmp.eq.s32.totalorder %s18, 0
      %p59 = por %p57, %p58
      %p60 = scmp.ne.s32.totalorder %s49, %s52
      %p61 = scmp.eq.s32.totalorder %s23, 1
      %p62 = por %p60, %p61
      %p63 = scmp.ne.s32.totalorder %s52, %s53
      %p64 = scmp.eq.s32.totalorder %s23, 0
      %p65 = por %p63, %p64
      %p66 = scmp.ne.s32.totalorder %s52, %s53
      %p67 = scmp.eq.s32.totalorder %s24, 1
      %p68 = por %p66, %p67
      %p70 = scmp.ne.s32.totalorder %s53, %s69
      %p71 = scmp.eq.s32.totalorder %s24, 0
      %p72 = por %p70, %p71
      %s74 = sadd.s32 %s73, 1
      %p77 = scmp.eq.s32.totalorder %s18, 1
      %p78 = scmp.ne.s32.totalorder %s73, %s75
      %p79 = scmp.eq.s32.totalorder %s18, 0
      %p80 = por %p78, %p79
      %p81 = scmp.ne.s32.totalorder %s73, %s75
      %p82 = scmp.eq.s32.totalorder %s23, 1
      %p83 = por %p81, %p82
      %p84 = scmp.ne.s32.totalorder %s75, %s76
      %p85 = scmp.eq.s32.totalorder %s23, 0
      %p86 = por %p84, %p85
      %p87 = scmp.ne.s32.totalorder %s75, %s76
      %p88 = scmp.eq.s32.totalorder %s24, 1
      %p89 = por %p87, %p88
      %p91 = scmp.ne.s32.totalorder %s76, %s90
      %p92 = scmp.eq.s32.totalorder %s24, 0
      %p93 = por %p91, %p92
      %s95 = sadd.s32 %s94, 1
      %p98 = scmp.eq.s32.totalorder %s18, 1
      %p99 = scmp.ne.s32.totalorder %s94, %s96
      %p100 = scmp.eq.s32.totalorder %s18, 0
      %p101 = por %p99, %p100
      %p102 = scmp.ne.s32.totalorder %s94, %s96
      %p103 = scmp.eq.s32.totalorder %s23, 1
      %p104 = por %p102, %p103
      %p105 = scmp.ne.s32.totalorder %s96, %s97
      %p106 = scmp.eq.s32.totalorder %s23, 0
      %p107 = por %p105, %p106
      %p108 = scmp.ne.s32.totalorder %s96, %s97
      %p109 = scmp.eq.s32.totalorder %s24, 1
      %p110 = por %p108, %p109
      %p112 = scmp.ne.s32.totalorder %s97, %s111
      %p113 = scmp.eq.s32.totalorder %s24, 0
      %p114 = por %p112, %p113
      %s116 = sadd.s32 %s115, 1
      %p119 = scmp.eq.s32.totalorder %s18, 1
      %p120 = scmp.ne.s32.totalorder %s115, %s117
      %p121 = scmp.eq.s32.totalorder %s18, 0
      %p122 = por %p120, %p121
      %p123 = scmp.ne.s32.totalorder %s115, %s117
      %p124 = scmp.eq.s32.totalorder %s23, 1
      %p125 = por %p123, %p124
      %p126 = scmp.ne.s32.totalorder %s117, %s118
      %p127 = scmp.eq.s32.totalorder %s23, 0
      %p128 = por %p126, %p127
      %p129 = scmp.ne.s32.totalorder %s117, %s118
      %p130 = scmp.eq.s32.totalorder %s24, 1
      %p131 = por %p129, %p130
      %p133 = scmp.ne.s32.totalorder %s118, %s132
      %p134 = scmp.eq.s32.totalorder %s24, 0
      %p135 = por %p133, %p134
      %s137 = sadd.s32 %s136, 1
      %p140 = scmp.eq.s32.totalorder %s18, 1
      %p141 = scmp.ne.s32.totalorder %s136, %s138
      %p142 = scmp.eq.s32.totalorder %s18, 0
      %p143 = por %p141, %p142
      %p144 = scmp.ne.s32.totalorder %s136, %s138
      %p145 = scmp.eq.s32.totalorder %s23, 1
      %p146 = por %p144, %p145
      %p147 = scmp.ne.s32.totalorder %s138, %s139
      %p148 = scmp.eq.s32.totalorder %s23, 0
      %p149 = por %p147, %p148
      %p150 = scmp.ne.s32.totalorder %s138, %s139
      %p151 = scmp.eq.s32.totalorder %s24, 1
      %p152 = por %p150, %p151
      %p154 = scmp.ne.s32.totalorder %s139, %s153
      %p155 = scmp.eq.s32.totalorder %s24, 0
      %p156 = por %p154, %p155
      %s158 = sadd.s32 %s157, 1
      %p161 = scmp.eq.s32.totalorder %s18, 1
      %p162 = scmp.ne.s32.totalorder %s157, %s159
      %p163 = scmp.eq.s32.totalorder %s18, 0
      %p164 = por %p162, %p163
      %p165 = scmp.ne.s32.totalorder %s157, %s159
      %p166 = scmp.eq.s32.totalorder %s23, 1
      %p167 = por %p165, %p166
      %p168 = scmp.ne.s32.totalorder %s159, %s160
      %p169 = scmp.eq.s32.totalorder %s23, 0
      %p170 = por %p168, %p169
      %p171 = scmp.ne.s32.totalorder %s159, %s160
      %p172 = scmp.eq.s32.totalorder %s24, 1
      %p173 = por %p171, %p172
      %p175 = scmp.ne.s32.totalorder %s160, %s174
      %p176 = scmp.eq.s32.totalorder %s24, 0
      %p177 = por %p175, %p176
      %s179 = sadd.s32 %s178, 1
      %p182 = scmp.eq.s32.totalorder %s18, 1
      %p183 = scmp.ne.s32.totalorder %s178, %s180
      %p184 = scmp.eq.s32.totalorder %s18, 0
      %p185 = por %p183, %p184
      %p186 = scmp.ne.s32.totalorder %s178, %s180
      %p187 = scmp.eq.s32.totalorder %s23, 1
      %p188 = por %p186, %p187
      %p189 = scmp.ne.s32.totalorder %s180, %s181
      %p190 = scmp.eq.s32.totalorder %s23, 0
      %p191 = por %p189, %p190
      %p192 = scmp.ne.s32.totalorder %s180, %s181
      %p193 = scmp.eq.s32.totalorder %s24, 1
      %p194 = por %p192, %p193
      %p196 = scmp.ne.s32.totalorder %s181, %s195
      %p197 = scmp.eq.s32.totalorder %s24, 0
      %p198 = por %p196, %p197
      %s200 = sadd.s32 %s199, 1
      %p203 = scmp.eq.s32.totalorder %s18, 1
      %p204 = scmp.ne.s32.totalorder %s199, %s201
      %p205 = scmp.eq.s32.totalorder %s18, 0
      %p206 = por %p204, %p205
      %p207 = scmp.ne.s32.totalorder %s199, %s201
      %p208 = scmp.eq.s32.totalorder %s23, 1
      %p209 = por %p207, %p208
      %p210 = scmp.ne.s32.totalorder %s201, %s202
      %p211 = scmp.eq.s32.totalorder %s23, 0
      %p212 = por %p210, %p211
      %p213 = scmp.ne.s32.totalorder %s201, %s202
      %p214 = scmp.eq.s32.totalorder %s24, 1
      %p215 = por %p213, %p214
      %p217 = scmp.ne.s32.totalorder %s202, %s216
      %p218 = scmp.eq.s32.totalorder %s24, 0
      %p219 = por %p217, %p218
      %s221 = sadd.s32 %s220, 1
      %p224 = scmp.eq.s32.totalorder %s18, 1
      %p225 = scmp.ne.s32.totalorder %s220, %s222
      %p226 = scmp.eq.s32.totalorder %s18, 0
      %p227 = por %p225, %p226
      %p228 = scmp.ne.s32.totalorder %s220, %s222
      %p229 = scmp.eq.s32.totalorder %s23, 1
      %p230 = por %p228, %p229
      %p231 = scmp.ne.s32.totalorder %s222, %s223
      %p232 = scmp.eq.s32.totalorder %s23, 0
      %p233 = por %p231, %p232
      %p234 = scmp.ne.s32.totalorder %s222, %s223
      %p235 = scmp.eq.s32.totalorder %s24, 1
      %p236 = por %p234, %p235
      %p238 = scmp.ne.s32.totalorder %s223, %s237
      %p239 = scmp.eq.s32.totalorder %s24, 0
      %p240 = por %p238, %p239
      %s241 = ssub.s32 %s18, %s25
      %p242 = scmp.eq.s32.totalorder %s241, 0
      %s244 = sadd.s32 %s243, 1
      %s245 = scalar_select %p242, %s243, %s244
      %p248 = pneg %p242
      %p249 = scmp.eq.s32.totalorder %s18, 1
      %p250 = por %p248, %p249
      %p251 = scmp.ne.s32.totalorder %s243, %s246
      %p252 = scmp.eq.s32.totalorder %s18, 0
      %p253 = por %p251, %p252
      %p254 = scmp.ne.s32.totalorder %s243, %s246
      %p255 = scmp.eq.s32.totalorder %s23, 1
      %p256 = por %p254, %p255
      %p257 = scmp.ne.s32.totalorder %s246, %s247
      %p258 = scmp.eq.s32.totalorder %s23, 0
      %p259 = por %p257, %p258
      %p260 = scmp.ne.s32.totalorder %s246, %s247
      %p261 = scmp.eq.s32.totalorder %s24, 1
      %p262 = por %p260, %p261
      %p264 = scmp.ne.s32.totalorder %s247, %s263
      %p265 = scmp.eq.s32.totalorder %s24, 0
      %p266 = por %p264, %p265
      %s267 = ssub.s32 %s18, %s25
      %p268 = scmp.eq.s32.totalorder %s267, 0
      %s270 = sadd.s32 %s269, 1
      %s271 = scalar_select %p268, %s269, %s270
      %p274 = pneg %p268
      %p275 = scmp.eq.s32.totalorder %s18, 1
      %p276 = por %p274, %p275
      %p277 = scmp.ne.s32.totalorder %s269, %s272
      %p278 = scmp.eq.s32.totalorder %s18, 0
      %p279 = por %p277, %p278
      %p280 = scmp.ne.s32.totalorder %s269, %s272
      %p281 = scmp.eq.s32.totalorder %s23, 1
      %p282 = por %p280, %p281
      %p283 = scmp.ne.s32.totalorder %s272, %s273
      %p284 = scmp.eq.s32.totalorder %s23, 0
      %p285 = por %p283, %p284
      %p286 = scmp.ne.s32.totalorder %s272, %s273
      %p287 = scmp.eq.s32.totalorder %s24, 1
      %p288 = por %p286, %p287
      %p290 = scmp.ne.s32.totalorder %s273, %s289
      %p291 = scmp.eq.s32.totalorder %s24, 0
      %p292 = por %p290, %p291
      %p293 = scmp.le.s32.totalorder 1, %s18
      %p294 = scmp.lt.s32.totalorder %s18, 3
      %p295 = pnand %p293, %p294
      %p296 = pneg %p295
      // Predicated region
      $region9: #{lsn_init_forward.1} parent=5 // pred_check
        _
      $region10: #{lsn_init_forward.1} parent=5 // pred_check_branch
        %298 = sbr.rel (%p295) target = $region12
      $region11: #{lsn_init_forward.1} parent=5 // pred_region
        %s299 = ssub.s32 %s18, 1
        // Predicated region
        $region13: #{lsn_init_forward.1} parent=11 // pred_check
          %p300 = pneg %p39
        $region14: #{lsn_init_forward.1} parent=11 // pred_check_branch
          %302 = sbr.rel (%p300) target = $region16
        $region15: #{lsn_init_forward.1} parent=11 // pred_region
          _
        $region16: #{lsn_init_forward.1} parent=11 // pred_fallthru
          _
        // Predicated region
        $region17: #{lsn_init_forward.1} parent=11 // pred_check
          %p303 = pneg %p86
        $region18: #{lsn_init_forward.1} parent=11 // pred_check_branch
          %305 = sbr.rel (%p303) target = $region20
        $region19: #{lsn_init_forward.1} parent=11 // pred_region
          _
        $region20: #{lsn_init_forward.1} parent=11 // pred_fallthru
          _
        // Predicated region
        $region21: #{lsn_init_forward.1} parent=11 // pred_check
          %p306 = pneg %p107
        $region22: #{lsn_init_forward.1} parent=11 // pred_check_branch
          %308 = sbr.rel (%p306) target = $region24
        $region23: #{lsn_init_forward.1} parent=11 // pred_region
          _
        $region24: #{lsn_init_forward.1} parent=11 // pred_fallthru
          _
        // Predicated region
        $region25: #{lsn_init_forward.1} parent=11 // pred_check
          %p309 = pneg %p128
        $region26: #{lsn_init_forward.1} parent=11 // pred_check_branch
          %311 = sbr.rel (%p309) target = $region28
        $region27: #{lsn_init_forward.1} parent=11 // pred_region
          _
        $region28: #{lsn_init_forward.1} parent=11 // pred_fallthru
          _
        // Predicated region
        $region29: #{lsn_init_forward.1} parent=11 // pred_check
          %p312 = pneg %p149
        $region30: #{lsn_init_forward.1} parent=11 // pred_check_branch
          %314 = sbr.rel (%p312) target = $region32
        $region31: #{lsn_init_forward.1} parent=11 // pred_region
          _
        $region32: #{lsn_init_forward.1} parent=11 // pred_fallthru
          _
        // Predicated region
        $region33: #{lsn_init_forward.1} parent=11 // pred_check
          %p315 = pneg %p170
        $region34: #{lsn_init_forward.1} parent=11 // pred_check_branch
          %317 = sbr.rel (%p315) target = $region36
        $region35: #{lsn_init_forward.1} parent=11 // pred_region
          _
        $region36: #{lsn_init_forward.1} parent=11 // pred_fallthru
          _
        // Predicated region
        $region37: #{lsn_init_forward.1} parent=11 // pred_check
          %p318 = pneg %p191
        $region38: #{lsn_init_forward.1} parent=11 // pred_check_branch
          %320 = sbr.rel (%p318) target = $region40
        $region39: #{lsn_init_forward.1} parent=11 // pred_region
          _
        $region40: #{lsn_init_forward.1} parent=11 // pred_fallthru
          _
        // Predicated region
        $region41: #{lsn_init_forward.1} parent=11 // pred_check
          %p321 = pneg %p212
        $region42: #{lsn_init_forward.1} parent=11 // pred_check_branch
          %323 = sbr.rel (%p321) target = $region44
        $region43: #{lsn_init_forward.1} parent=11 // pred_region
          _
        $region44: #{lsn_init_forward.1} parent=11 // pred_fallthru
          _
        // Predicated region
        $region45: #{lsn_init_forward.1} parent=11 // pred_check
          %p324 = pneg %p233
        $region46: #{lsn_init_forward.1} parent=11 // pred_check_branch
          %326 = sbr.rel (%p324) target = $region48
        $region47: #{lsn_init_forward.1} parent=11 // pred_region
          _
        $region48: #{lsn_init_forward.1} parent=11 // pred_fallthru
          _
      $region12: #{lsn_init_forward.1} parent=5 // pred_fallthru
        _
      %p327 = scmp.lt.s32.totalorder %s18, 2
      // Predicated region
      $region49: #{lsn_init_forward.1} parent=5 // pred_check
        %p328 = pneg %p327
      $region50: #{lsn_init_forward.1} parent=5 // pred_check_branch
        %330 = sbr.rel (%p328) target = $region52
      $region51: #{lsn_init_forward.1} parent=5 // pred_region
        // Predicated region
        $region53: #{lsn_init_forward.1} parent=51 // pred_check
          %p331 = pneg %p59
        $region54: #{lsn_init_forward.1} parent=51 // pred_check_branch
          %333 = sbr.rel (%p331) target = $region56
        $region55: #{lsn_init_forward.1} parent=51 // pred_region
          %s334 = smul.u32 2, %s18
          %p335 = scmp.lt.s32.totalorder %s334, 3
          %s336 = scalar_select %p335, %s334, 3
          %s337 = smul.addr %s336, 8
          %s338 = scalar_lea.vmem %s1, %s337
          %s339 = smul.u32 2, %s18
        $region56: #{lsn_init_forward.1} parent=51 // pred_fallthru
          _
      $region52: #{lsn_init_forward.1} parent=5 // pred_fallthru
        _
      %p340 = scmp.le.s32.totalorder 1, %s18
      %p341 = scmp.lt.s32.totalorder %s18, 3
      %p342 = pnand %p340, %p341
      %p343 = pneg %p342
      // Predicated region
      $region57: #{lsn_init_forward.1} parent=5 // pred_check
        _
      $region58: #{lsn_init_forward.1} parent=5 // pred_check_branch
        %345 = sbr.rel (%p342) target = $region60
      $region59: #{lsn_init_forward.1} parent=5 // pred_region
        %s346 = ssub.s32 %s18, 1
        %p347 = pneg %p39
        %p348 = pneg %p36
        %s349 = smul.u32 2, %s23
        %p350 = scmp.lt.s32.totalorder %s349, 3
        %s351 = scalar_select %p350, %s349, 3
        %s352 = smul.addr %s351, 8
        %s353 = scalar_lea.vmem %s1, %s352
        %p354 = pneg %p65
        %p355 = pneg %p62
        %p356 = pneg %p86
        %p357 = pneg %p83
        %p358 = pneg %p107
        %p359 = pneg %p104
        %p360 = pneg %p128
        %p361 = pneg %p125
        %p362 = pneg %p149
        %p363 = pneg %p146
        %p364 = pneg %p170
        %p365 = pneg %p167
        %p366 = pneg %p191
        %p367 = pneg %p188
        %p368 = pneg %p212
        %p369 = pneg %p209
        %p370 = pneg %p233
        %p371 = pneg %p230
        %p372 = pneg %p259
        %p373 = pneg %p256
        %s374 = smul.u32 2, %s23
        %p375 = scmp.lt.s32.totalorder %s374, 3
        %s376 = scalar_select %p375, %s374, 3
        %s377 = smul.addr %s376, 8
        %s378 = scalar_lea.vmem %s10, %s377
        %p379 = pneg %p285
        %p380 = pneg %p282
        %s381 = sand.u32 %s272, 1
        %s382 = sand.u32 %s272, 1
        %s383 = smul.addr %s382, 32
        %s384 = scalar_lea.vmem [#allocation2], %s383
        %s385 = smul.u32 2, %s23
        %p386 = scmp.lt.s32.totalorder %s385, 3
        %s387 = scalar_select %p386, %s385, 3
        %s388 = smul.addr %s387, 8
        %s389 = scalar_lea.vmem %s1, %s388
        %s390 = smul.u32 2, %s23
        %s391 = smul.u32 2, %s23
        %p392 = scmp.lt.s32.totalorder %s391, 3
        %s393 = scalar_select %p392, %s391, 3
        %s394 = smul.addr %s393, 8
        %s395 = scalar_lea.vmem %s10, %s394
        %s396 = smul.u32 2, %s23
        %s397 = smul.u32 2, %s23
        %v399 = vld [vmem:[%s0] sm:$0xff]
        %v400 = vld [vmem:[%s0 + $0x8] sm:$0xff]
        %v401 = vld [vmem:[%s389] sm:$0xff]
        %v402 = vld [vmem:[%s389 + $0x8] sm:$0xff]
        %403 = vrot.lane.b32.xlu0 %v401, 17
        %v404 = vpop.permute.xlu0 %403
        %405 = vrot.lane.b32.xlu0 %v402, 17
        %v406 = vpop.permute.xlu0 %405
        %v407 = vlaneseq
        %v408 = vand.u32 %v407, 127
        %vm409 = vcmp.lt.s32.totalorder %v408, 17
        %v410 = vsel %vm409, %v404, %v406
        %v411 = vsel %vm409, %v406, %v404
        %v412 = vlaneseq
        %v413 = vshrl.u32 %v412, 7
        %v414 = vsub.s32 0, %v413
        %v415 = vrot.slane %v399, %v414
        %v416 = vlaneseq
        %v417 = vshrl.u32 %v416, 7
        %v418 = vsub.s32 0, %v417
        %v419 = vrot.slane %v400, %v418
        %v420 = vmul.f32 %v411, %v415
        %v421 = vmul.f32 %v410, %v419
        %422 = vrot.lane.b32.xlu0 %v401, 16
        %v423 = vpop.permute.xlu0 %422
        %424 = vrot.lane.b32.xlu0 %v402, 16
        %v425 = vpop.permute.xlu0 %424
        %vm426 = vcmp.lt.s32.totalorder %v408, 16
        %v427 = vsel %vm426, %v423, %v425
        %v428 = vsel %vm426, %v425, %v423
        %v429 = vlaneseq
        %v430 = vshrl.u32 %v429, 7
        %v431 = vsub.s32 1, %v430
        %v432 = vrot.slane %v399, %v431
        %v433 = vlaneseq
        %v434 = vshrl.u32 %v433, 7
        %v435 = vsub.s32 1, %v434
        %v436 = vrot.slane %v400, %v435
        %v437 = vmul.f32 %v428, %v432
        %v438 = vmul.f32 %v427, %v436
        %439 = vrot.lane.b32.xlu0 %v401, 15
        %v440 = vpop.permute.xlu0 %439
        %441 = vrot.lane.b32.xlu0 %v402, 15
        %v442 = vpop.permute.xlu0 %441
        %vm443 = vcmp.lt.s32.totalorder %v408, 15
        %v444 = vsel %vm443, %v440, %v442
        %v445 = vsel %vm443, %v442, %v440
        %v446 = vlaneseq
        %v447 = vshrl.u32 %v446, 7
        %v448 = vsub.s32 2, %v447
        %v449 = vrot.slane %v399, %v448
        %v450 = vlaneseq
        %v451 = vshrl.u32 %v450, 7
        %v452 = vsub.s32 2, %v451
        %v453 = vrot.slane %v400, %v452
        %v454 = vmul.f32 %v445, %v449
        %v455 = vmul.f32 %v444, %v453
        %456 = vrot.lane.b32.xlu0 %v401, 1
        %v457 = vpop.permute.xlu0 %456
        %458 = vrot.lane.b32.xlu0 %v402, 1
        %v459 = vpop.permute.xlu0 %458
        %vm460 = vcmp.lt.s32.totalorder %v408, 1
        %v461 = vsel %vm460, %v457, %v459
        %v462 = vsel %vm460, %v459, %v457
        %v463 = vlaneseq
        %v464 = vshrl.u32 %v463, 7
        %v465 = vsub.s32 3, %v464
        %v466 = vrot.slane %v399, %v465
        %v467 = vlaneseq
        %v468 = vshrl.u32 %v467, 7
        %v469 = vsub.s32 3, %v468
        %v470 = vrot.slane %v400, %v469
        %v471 = vmul.f32 %v462, %v466
        %v472 = vmul.f32 %v461, %v470
        %473 = vrot.lane.b32.xlu0 %v401, 127
        %v474 = vpop.permute.xlu0 %473
        %475 = vrot.lane.b32.xlu0 %v402, 127
        %v476 = vpop.permute.xlu0 %475
        %vm477 = vcmp.lt.s32.totalorder %v408, 127
        %v478 = vsel %vm477, %v474, %v476
        %v479 = vsel %vm477, %v476, %v474
        %v480 = vlaneseq
        %v481 = vshrl.u32 %v480, 7
        %v482 = vsub.s32 4, %v481
        %v483 = vrot.slane %v399, %v482
        %v484 = vlaneseq
        %v485 = vshrl.u32 %v484, 7
        %v486 = vsub.s32 4, %v485
        %v487 = vrot.slane %v400, %v486
        %v488 = vmul.f32 %v478, %v483
        %v489 = vmul.f32 %v479, %v487
        %490 = vrot.lane.b32.xlu0 %v401, 113
        %v491 = vpop.permute.xlu0 %490
        %492 = vrot.lane.b32.xlu0 %v402, 113
        %v493 = vpop.permute.xlu0 %492
        %vm494 = vcmp.lt.s32.totalorder %v408, 113
        %v495 = vsel %vm494, %v491, %v493
        %v496 = vsel %vm494, %v493, %v491
        %v497 = vlaneseq
        %v498 = vshrl.u32 %v497, 7
        %v499 = vsub.s32 5, %v498
        %v500 = vrot.slane %v399, %v499
        %v501 = vlaneseq
        %v502 = vshrl.u32 %v501, 7
        %v503 = vsub.s32 5, %v502
        %v504 = vrot.slane %v400, %v503
        %v505 = vmul.f32 %v495, %v500
        %v506 = vmul.f32 %v496, %v504
        %507 = vrot.lane.b32.xlu0 %v401, 112
        %v508 = vpop.permute.xlu0 %507
        %509 = vrot.lane.b32.xlu0 %v402, 112
        %v510 = vpop.permute.xlu0 %509
        %vm511 = vcmp.lt.s32.totalorder %v408, 112
        %v512 = vsel %vm511, %v508, %v510
        %v513 = vsel %vm511, %v510, %v508
        %v514 = vlaneseq
        %v515 = vshrl.u32 %v514, 7
        %v516 = vsub.s32 6, %v515
        %v517 = vrot.slane %v399, %v516
        %v518 = vlaneseq
        %v519 = vshrl.u32 %v518, 7
        %v520 = vsub.s32 6, %v519
        %v521 = vrot.slane %v400, %v520
        %v522 = vmul.f32 %v512, %v517
        %v523 = vmul.f32 %v513, %v521
        %524 = vrot.lane.b32.xlu0 %v401, 111
        %v525 = vpop.permute.xlu0 %524
        %526 = vrot.lane.b32.xlu0 %v402, 111
        %v527 = vpop.permute.xlu0 %526
        %vm528 = vcmp.lt.s32.totalorder %v408, 111
        %v529 = vsel %vm528, %v525, %v527
        %v530 = vsel %vm528, %v527, %v525
        %v531 = vlaneseq
        %v532 = vshrl.u32 %v531, 7
        %v533 = vsub.s32 7, %v532
        %v534 = vrot.slane %v399, %v533
        %v535 = vlaneseq
        %v536 = vshrl.u32 %v535, 7
        %v537 = vsub.s32 7, %v536
        %v538 = vrot.slane %v400, %v537
        %v539 = vmul.f32 %v529, %v534
        %v540 = vmul.f32 %v530, %v538
        %v541 = vld [vmem:[%s2] sm:$0xf]
        %v542 = vpack.c.bf16 %v437, %v420
        %v543 = vpack.c.bf16 %v438, %v421
        %v544 = vpack.c.bf16 %v471, %v454
        %v545 = vpack.c.bf16 %v472, %v455
        %v546 = vpack.c.bf16 %v488, %v401
        %v547 = vpack.c.bf16 %v489, %v402
        %v548 = vpack.c.bf16 %v522, %v505
        %v549 = vpack.c.bf16 %v523, %v506
        %v550 = vpack.c.bf16 %v539, %v539
        %v551 = vpack.c.bf16 %v540, %v540
        %v552 = vld [vmem:[%s3] sm:$0xff]
        %554 = vset.pattern.permute.xlu0 0
        %555 = vperm.xlu0 %554, %v552
        %v556 = vpop.permute.xlu0 %555
        %vm558 = vcmask 588800
        %v560 = vsel %vm558, %v541, 0
        %vm562 = vcmask 1043456
        %v564 = vsel %vm562, %v550, 0
        %v567 = vsel %vm562, %v551, 0
        %569 = vmatprep.subr.bf16.mxu0 %v543
        %570 = vmatpush1.bf16.msra.mxu0 %v542
        %571 = vmatprep.subr.bf16.mxu0 %v545
        %572 = vmatpush1.bf16.msra.mxu0 %v544
        %573 = vmatprep.subr.bf16.mxu0 %v547
        %574 = vmatpush1.bf16.msra.mxu0 %v546
        %575 = vmatprep.subr.bf16.mxu0 %v549
        %576 = vmatpush1.bf16.msra.mxu0 %v548
        %577 = vmatprep.subr.bf16.mxu0 %v567
        %578 = vmatpush1.bf16.msra.mxu0 %v564
        %579 = vmatprep.subr.bf16.mxu0 0
        %580 = vmatpush1.bf16.msra.mxu0 0
        %581 = vmatprep.subr.bf16.mxu0 0
        %582 = vmatpush1.bf16.msra.mxu0 0
        %583 = vmatprep.subr.bf16.mxu0 0
        %584 = vmatpush1.bf16.msra.mxu0 0
        %585 = vmatprep.subr.bf16.mxu0 0
        %586 = vmatpush1.bf16.msra.mxu0 0
        %587 = vmatprep.subr.bf16.mxu0 0
        %588 = vmatpush1.bf16.msra.mxu0 0
        %589 = vmatprep.subr.bf16.mxu0 0
        %590 = vmatpush1.bf16.msra.mxu0 0
        %591 = vmatprep.subr.bf16.mxu0 0
        %592 = vmatpush1.bf16.msra.mxu0 0
        %593 = vmatprep.subr.bf16.mxu0 0
        %594 = vmatpush1.bf16.msra.mxu0 0
        %595 = vmatprep.subr.bf16.mxu0 0
        %596 = vmatpush1.bf16.msra.mxu0 0
        %597 = vmatprep.subr.bf16.mxu0 0
        %598 = vmatpush1.bf16.msra.mxu0 0
        %599 = vmatprep.subr.bf16.mxu0 0
        %600 = vmatpush1.bf16.msra.mxu0 0
        %601 = vmatprep.mubr.bf16.mxu0 0
        %602 = vmatmul.mubr.bf16.gmra.mrb[0].mxu0 %v560
        %v603 = vpop.f32.mrb[0].mxu0
        %v604 = vadd.f32 %v556, %v603
        %v605 = vpop.f32.mrb[0].mxu0
        %v606 = vadd.f32 %v556, %v605
        %v607 = vpop.f32.mrb[0].mxu0
        %v608 = vpop.f32.mrb[0].mxu0
        %609 = vdwg.mxu0
        %v610 = vmax.f32 %v604, 0.0
        %v611 = vmax.f32 %v606, 0.0
        %v612 = vld [vmem:[%s4] sm:$0xf]
        %v613 = vpack.c.bf16 %v610, %v610
        %v614 = vpack.c.bf16 %v611, %v611
        %v615 = vld [vmem:[%s5] sm:$0xff]
        %617 = vset.pattern.permute.xlu0 0
        %618 = vperm.xlu0 %617, %v615
        %v619 = vpop.permute.xlu0 %618
        %vm621 = vcmask 64512
        %v623 = vsel %vm621, %v612, 0
        %v626 = vsel %vm562, %v613, 0
        %v629 = vsel %vm562, %v614, 0
        %631 = vmatprep.subr.bf16.mxu0 %v629
        %632 = vmatpush1.bf16.msra.mxu0 %v626
        %633 = vmatprep.subr.bf16.mxu0 0
        %634 = vmatpush1.bf16.msra.mxu0 0
        %635 = vmatprep.subr.bf16.mxu0 0
        %636 = vmatpush1.bf16.msra.mxu0 0
        %637 = vmatprep.subr.bf16.mxu0 0
        %638 = vmatpush1.bf16.msra.mxu0 0
        %639 = vmatprep.subr.bf16.mxu0 0
        %640 = vmatpush1.bf16.msra.mxu0 0
        %641 = vmatprep.subr.bf16.mxu0 0
        %642 = vmatpush1.bf16.msra.mxu0 0
        %643 = vmatprep.subr.bf16.mxu0 0
        %644 = vmatpush1.bf16.msra.mxu0 0
        %645 = vmatprep.subr.bf16.mxu0 0
        %646 = vmatpush1.bf16.msra.mxu0 0
        %647 = vmatprep.subr.bf16.mxu0 0
        %648 = vmatpush1.bf16.msra.mxu0 0
        %649 = vmatprep.subr.bf16.mxu0 0
        %650 = vmatpush1.bf16.msra.mxu0 0
        %651 = vmatprep.subr.bf16.mxu0 0
        %652 = vmatpush1.bf16.msra.mxu0 0
        %653 = vmatprep.subr.bf16.mxu0 0
        %654 = vmatpush1.bf16.msra.mxu0 0
        %655 = vmatprep.subr.bf16.mxu0 0
        %656 = vmatpush1.bf16.msra.mxu0 0
        %657 = vmatprep.subr.bf16.mxu0 0
        %658 = vmatpush1.bf16.msra.mxu0 0
        %659 = vmatprep.subr.bf16.mxu0 0
        %660 = vmatpush1.bf16.msra.mxu0 0
        %661 = vmatprep.subr.bf16.mxu0 0
        %662 = vmatpush1.bf16.msra.mxu0 0
        %663 = vmatprep.mubr.bf16.mxu0 0
        %664 = vmatmul.mubr.bf16.gmra.mrb[0].mxu0 %v623
        %v665 = vpop.f32.mrb[0].mxu0
        %v666 = vadd.f32 %v619, %v665
        %v667 = vpop.f32.mrb[0].mxu0
        %v668 = vadd.f32 %v619, %v667
        %v669 = vpop.f32.mrb[0].mxu0
        %v670 = vpop.f32.mrb[0].mxu0
        %671 = vdwg.mxu0
        %v672 = vmax.f32 %v666, 0.0
        %v673 = vmax.f32 %v668, 0.0
        %674 = vrot.lane.b32.xlu0 %v672, 17
        %v675 = vpop.permute.xlu0 %674
        %676 = vrot.lane.b32.xlu0 %v673, 17
        %v677 = vpop.permute.xlu0 %676
        %v678 = vsel %vm409, %v675, %v677
        %v679 = vsel %vm409, %v677, %v675
        %v680 = vmul.f32 %v679, %v415
        %v681 = vmul.f32 %v678, %v419
        %682 = vrot.lane.b32.xlu0 %v672, 16
        %v683 = vpop.permute.xlu0 %682
        %684 = vrot.lane.b32.xlu0 %v673, 16
        %v685 = vpop.permute.xlu0 %684
        %v686 = vsel %vm426, %v683, %v685
        %v687 = vsel %vm426, %v685, %v683
        %v688 = vmul.f32 %v687, %v432
        %v689 = vmul.f32 %v686, %v436
        %690 = vrot.lane.b32.xlu0 %v672, 15
        %v691 = vpop.permute.xlu0 %690
        %692 = vrot.lane.b32.xlu0 %v673, 15
        %v693 = vpop.permute.xlu0 %692
        %v694 = vsel %vm443, %v691, %v693
        %v695 = vsel %vm443, %v693, %v691
        %v696 = vmul.f32 %v695, %v449
        %v697 = vmul.f32 %v694, %v453
        %698 = vrot.lane.b32.xlu0 %v672, 1
        %v699 = vpop.permute.xlu0 %698
        %700 = vrot.lane.b32.xlu0 %v673, 1
        %v701 = vpop.permute.xlu0 %700
        %v702 = vsel %vm460, %v699, %v701
        %v703 = vsel %vm460, %v701, %v699
        %v704 = vmul.f32 %v703, %v466
        %v705 = vmul.f32 %v702, %v470
        %706 = vrot.lane.b32.xlu0 %v672, 127
        %v707 = vpop.permute.xlu0 %706
        %708 = vrot.lane.b32.xlu0 %v673, 127
        %v709 = vpop.permute.xlu0 %708
        %v710 = vsel %vm477, %v707, %v709
        %v711 = vsel %vm477, %v709, %v707
        %v712 = vmul.f32 %v710, %v483
        %v713 = vmul.f32 %v711, %v487
        %714 = vrot.lane.b32.xlu0 %v672, 113
        %v715 = vpop.permute.xlu0 %714
        %716 = vrot.lane.b32.xlu0 %v673, 113
        %v717 = vpop.permute.xlu0 %716
        %v718 = vsel %vm494, %v715, %v717
        %v719 = vsel %vm494, %v717, %v715
        %v720 = vmul.f32 %v718, %v500
        %v721 = vmul.f32 %v719, %v504
        %722 = vrot.lane.b32.xlu0 %v672, 112
        %v723 = vpop.permute.xlu0 %722
        %724 = vrot.lane.b32.xlu0 %v673, 112
        %v725 = vpop.permute.xlu0 %724
        %v726 = vsel %vm511, %v723, %v725
        %v727 = vsel %vm511, %v725, %v723
        %v728 = vmul.f32 %v726, %v517
        %v729 = vmul.f32 %v727, %v521
        %730 = vrot.lane.b32.xlu0 %v672, 111
        %v731 = vpop.permute.xlu0 %730
        %732 = vrot.lane.b32.xlu0 %v673, 111
        %v733 = vpop.permute.xlu0 %732
        %v734 = vsel %vm528, %v731, %v733
        %v735 = vsel %vm528, %v733, %v731
        %v736 = vmul.f32 %v734, %v534
        %v737 = vmul.f32 %v735, %v538
        %v738 = vld [vmem:[%s6] sm:$0xf]
        %v739 = vpack.c.bf16 %v688, %v680
        %v740 = vpack.c.bf16 %v689, %v681
        %v741 = vpack.c.bf16 %v704, %v696
        %v742 = vpack.c.bf16 %v705, %v697
        %v743 = vpack.c.bf16 %v712, %v672
        %v744 = vpack.c.bf16 %v713, %v673
        %v745 = vpack.c.bf16 %v728, %v720
        %v746 = vpack.c.bf16 %v729, %v721
        %v747 = vpack.c.bf16 %v736, %v736
        %v748 = vpack.c.bf16 %v737, %v737
        %v749 = vld [vmem:[%s7] sm:$0xff]
        %751 = vset.pattern.permute.xlu0 0
        %752 = vperm.xlu0 %751, %v749
        %v753 = vpop.permute.xlu0 %752
        %v756 = vsel %vm558, %v738, 0
        %v759 = vsel %vm562, %v747, 0
        %v762 = vsel %vm562, %v748, 0
        %764 = vmatprep.subr.bf16.mxu0 %v740
        %765 = vmatpush1.bf16.msra.mxu0 %v739
        %766 = vmatprep.subr.bf16.mxu0 %v742
        %767 = vmatpush1.bf16.msra.mxu0 %v741
        %768 = vmatprep.subr.bf16.mxu0 %v744
        %769 = vmatpush1.bf16.msra.mxu0 %v743
        %770 = vmatprep.subr.bf16.mxu0 %v746
        %771 = vmatpush1.bf16.msra.mxu0 %v745
        %772 = vmatprep.subr.bf16.mxu0 %v762
        %773 = vmatpush1.bf16.msra.mxu0 %v759
        %774 = vmatprep.subr.bf16.mxu0 0
        %775 = vmatpush1.bf16.msra.mxu0 0
        %776 = vmatprep.subr.bf16.mxu0 0
        %777 = vmatpush1.bf16.msra.mxu0 0
        %778 = vmatprep.subr.bf16.mxu0 0
        %779 = vmatpush1.bf16.msra.mxu0 0
        %780 = vmatprep.subr.bf16.mxu0 0
        %781 = vmatpush1.bf16.msra.mxu0 0
        %782 = vmatprep.subr.bf16.mxu0 0
        %783 = vmatpush1.bf16.msra.mxu0 0
        %784 = vmatprep.subr.bf16.mxu0 0
        %785 = vmatpush1.bf16.msra.mxu0 0
        %786 = vmatprep.subr.bf16.mxu0 0
        %787 = vmatpush1.bf16.msra.mxu0 0
        %788 = vmatprep.subr.bf16.mxu0 0
        %789 = vmatpush1.bf16.msra.mxu0 0
        %790 = vmatprep.subr.bf16.mxu0 0
        %791 = vmatpush1.bf16.msra.mxu0 0
        %792 = vmatprep.subr.bf16.mxu0 0
        %793 = vmatpush1.bf16.msra.mxu0 0
        %794 = vmatprep.subr.bf16.mxu0 0
        %795 = vmatpush1.bf16.msra.mxu0 0
        %796 = vmatprep.mubr.bf16.mxu0 0
        %797 = vmatmul.mubr.bf16.gmra.mrb[0].mxu0 %v756
        %v798 = vpop.f32.mrb[0].mxu0
        %v799 = vadd.f32 %v753, %v798
        %v800 = vpop.f32.mrb[0].mxu0
        %v801 = vadd.f32 %v753, %v800
        %v802 = vpop.f32.mrb[0].mxu0
        %v803 = vpop.f32.mrb[0].mxu0
        %804 = vdwg.mxu0
        %v805 = vmax.f32 %v799, 0.0
        %v806 = vmax.f32 %v801, 0.0
        %v807 = vld [vmem:[%s8] sm:$0xf]
        %v808 = vld [vmem:[%s8 + $0x4] sm:$0xf]
        %v809 = vpack.c.bf16 %v805, %v805
        %v810 = vpack.c.bf16 %v806, %v806
        %v811 = vld [vmem:[%s9] sm:$0xff]
        %v812 = vld [vmem:[%s9 + $0x8] sm:$0xff]
        %814 = vset.pattern.permute.xlu0 0
        %815 = vperm.xlu0 %814, %v811
        %v816 = vpop.permute.xlu0 %815
        %819 = vset.pattern.permute.xlu0 0
        %820 = vperm.xlu0 %819, %v812
        %v821 = vpop.permute.xlu0 %820
        %v825 = vunpack.c.l.b16 %v807
        %v826 = vunpack.c.l.b16 %v808
        %v827 = vpack.c.b16 %v826, %v825
        %v829 = vsel %vm621, %v827, 0
        %v832 = vsel %vm562, %v809, 0
        %v835 = vsel %vm562, %v810, 0
        %837 = vmatprep.subr.bf16.mxu0 %v835
        %838 = vmatpush1.bf16.msra.mxu0 %v832
        %839 = vmatprep.subr.bf16.mxu0 0
        %840 = vmatpush1.bf16.msra.mxu0 0
        %841 = vmatprep.subr.bf16.mxu0 0
        %842 = vmatpush1.bf16.msra.mxu0 0
        %843 = vmatprep.subr.bf16.mxu0 0
        %844 = vmatpush1.bf16.msra.mxu0 0
        %845 = vmatprep.subr.bf16.mxu0 0
        %846 = vmatpush1.bf16.msra.mxu0 0
        %847 = vmatprep.subr.bf16.mxu0 0
        %848 = vmatpush1.bf16.msra.mxu0 0
        %849 = vmatprep.subr.bf16.mxu0 0
        %850 = vmatpush1.bf16.msra.mxu0 0
        %851 = vmatprep.subr.bf16.mxu0 0
        %852 = vmatpush1.bf16.msra.mxu0 0
        %853 = vmatprep.subr.bf16.mxu0 0
        %854 = vmatpush1.bf16.msra.mxu0 0
        %855 = vmatprep.subr.bf16.mxu0 0
        %856 = vmatpush1.bf16.msra.mxu0 0
        %857 = vmatprep.subr.bf16.mxu0 0
        %858 = vmatpush1.bf16.msra.mxu0 0
        %859 = vmatprep.subr.bf16.mxu0 0
        %860 = vmatpush1.bf16.msra.mxu0 0
        %861 = vmatprep.subr.bf16.mxu0 0
        %862 = vmatpush1.bf16.msra.mxu0 0
        %863 = vmatprep.subr.bf16.mxu0 0
        %864 = vmatpush1.bf16.msra.mxu0 0
        %865 = vmatprep.subr.bf16.mxu0 0
        %866 = vmatpush1.bf16.msra.mxu0 0
        %867 = vmatprep.subr.bf16.mxu0 0
        %868 = vmatpush1.bf16.msra.mxu0 0
        %869 = vmatprep.mubr.bf16.mxu0 0
        %870 = vmatmul.mubr.bf16.gmra.mrb[0].mxu0 %v829
        %v871 = vpop.f32.mrb[0].mxu0
        %v872 = vadd.f32 %v816, %v871
        %v873 = vpop.f32.mrb[0].mxu0
        %v874 = vadd.f32 %v816, %v873
        %v875 = vpop.f32.mrb[0].mxu0
        %v876 = vadd.f32 %v821, %v875
        %v877 = vpop.f32.mrb[0].mxu0
        %v878 = vadd.f32 %v821, %v877
        %879 = vdwg.mxu0
        %880 = vst [vmem:[%s395] sm:$0xff] %v805
        %881 = vst [vmem:[%s395 + $0x8] sm:$0xff] %v806
        %882 = vst [vmem:[%s384] sm:$0xff] %v872
        %883 = vst [vmem:[%s384 + $0x8] sm:$0xff] %v874
        %884 = vst [vmem:[%s384 + $0x10] sm:$0xff] %v876
        %885 = vst [vmem:[%s384 + $0x18] sm:$0xff] %v878
        %s886 = smul.u32 2, %s23
        %p887 = scmp.lt.s32.totalorder %s886, 3
        %s888 = scalar_select %p887, %s886, 3
        %s889 = smul.addr %s888, 8
        %s890 = scalar_lea.vmem %s10, %s889
        %s891 = sand.u32 %s272, 1
        %s892 = sand.u32 %s272, 1
        %s893 = smul.addr %s892, 32
        %s894 = scalar_lea.vmem [#allocation2], %s893
        // Predicated region
        $region61: #{lsn_init_forward.1} parent=59 // pred_check
          %p895 = pneg %p256
        $region62: #{lsn_init_forward.1} parent=59 // pred_check_branch
          %897 = sbr.rel (%p895) target = $region64
        $region63: #{lsn_init_forward.1} parent=59 // pred_region
          %s898 = smul.u32 2, %s23
        $region64: #{lsn_init_forward.1} parent=59 // pred_fallthru
          _
        // Predicated region
        $region65: #{lsn_init_forward.1} parent=59 // pred_check
          %p899 = pneg %p282
        $region66: #{lsn_init_forward.1} parent=59 // pred_check_branch
          %901 = sbr.rel (%p899) target = $region68
        $region67: #{lsn_init_forward.1} parent=59 // pred_region
          %s902 = smul.u32 2, %s23
          %s903 = smul.addr %s902, 8
          %s904 = scalar_lea.vmem %s11, %s903
          // Predicated region
          $region69: #{lsn_init_forward.1} parent=67 // pred_check
            _
          $region70: #{lsn_init_forward.1} parent=67 // pred_check_branch
            %906 = sbr.rel (0) target = $region72
          $region71: #{lsn_init_forward.1} parent=67 // pred_region
            // Predicated region
            $region73: #{lsn_init_forward.1} parent=71 // pred_check
              _
            $region74: #{lsn_init_forward.1} parent=71 // pred_check_branch
              %908 = sbr.rel (0) target = $region76
            $region75: #{lsn_init_forward.1} parent=71 // pred_region
              loop: start=0, step=1, limit=1
              $region77: #{lsn_init_forward.1} parent=75 // loop_pre_header
                _
              $region78: #{lsn_init_forward.1} parent=75 // loop_header
                %s910 = sphi 0, %s914
                %p911 = scmp.ge.s32.totalorder %s910, 1
                %s915 = sphi %s894, %s894
                %s916 = sphi %s904, %s904
              $region79: #{lsn_init_forward.1} parent=75 // loop_header_branch
                %913 = sbr.rel (%p911) target = $region83
              $region80: #{lsn_init_forward.1} parent=75 // loop_body
                %v917 = vld [vmem:[%s915] sm:$0xff]
                %918 = vst [vmem:[%s916] sm:$0xff] %v917
                %v919 = vld [vmem:[%s915 + $0x8] sm:$0xff]
                %920 = vst [vmem:[%s916 + $0x8] sm:$0xff] %v919
                %v921 = vld [vmem:[%s915 + $0x10] sm:$0xff]
                %922 = vst [vmem:[%s916 + $0x20] sm:$0xff] %v921
                %v923 = vld [vmem:[%s915 + $0x18] sm:$0xff]
                %924 = vst [vmem:[%s916 + $0x28] sm:$0xff] %v923
              $region81: #{lsn_init_forward.1} parent=75 // loop_footer
                %s914 = sadd.s32 1, %s910
              $region82: #{lsn_init_forward.1} parent=75 // loop_footer_branch
                %909 = sbr.rel target = $region78
              $region83: #{lsn_init_forward.1} parent=75 // loop_exit
                _
            $region76: #{lsn_init_forward.1} parent=71 // pred_fallthru
              _
            // Predicated region
            $region84: #{lsn_init_forward.1} parent=71 // pred_check
              _
            $region85: #{lsn_init_forward.1} parent=71 // pred_check_branch
              %926 = sbr.rel target = $region87
            $region86: #{lsn_init_forward.1} parent=71 // pred_region
              _
            $region87: #{lsn_init_forward.1} parent=71 // pred_fallthru
              _
          $region72: #{lsn_init_forward.1} parent=67 // pred_fallthru
            _
          %927 = vnop
        $region68: #{lsn_init_forward.1} parent=59 // pred_fallthru
          _
      $region60: #{lsn_init_forward.1} parent=5 // pred_fallthru
        _
      %p928 = scmp.le.s32.totalorder 2, %s18
      // Predicated region
      $region88: #{lsn_init_forward.1} parent=5 // pred_check
        %p929 = pneg %p928
      $region89: #{lsn_init_forward.1} parent=5 // pred_check_branch
        %931 = sbr.rel (%p929) target = $region91
      $region90: #{lsn_init_forward.1} parent=5 // pred_region
        %s932 = ssub.s32 %s18, 2
        // Predicated region
        $region92: #{lsn_init_forward.1} parent=90 // pred_check
          %p933 = pneg %p262
        $region93: #{lsn_init_forward.1} parent=90 // pred_check_branch
          %935 = sbr.rel (%p933) target = $region95
        $region94: #{lsn_init_forward.1} parent=90 // pred_region
          %s936 = smul.u32 2, %s24
          %p937 = scmp.lt.s32.totalorder %s936, 3
          %s938 = scalar_select %p937, %s936, 3
          %s939 = smul.addr %s938, 8
          %s940 = scalar_lea.vmem %s10, %s939
        $region95: #{lsn_init_forward.1} parent=90 // pred_fallthru
          _
        // Predicated region
        $region96: #{lsn_init_forward.1} parent=90 // pred_check
          %p941 = pneg %p288
        $region97: #{lsn_init_forward.1} parent=90 // pred_check_branch
          %943 = sbr.rel (%p941) target = $region99
        $region98: #{lsn_init_forward.1} parent=90 // pred_region
          %s944 = sand.u32 %s273, 1
          %s945 = sand.u32 %s273, 1
          %s946 = smul.addr %s945, 32
          %s947 = scalar_lea.vmem [#allocation2], %s946
        $region99: #{lsn_init_forward.1} parent=90 // pred_fallthru
          _
      $region91: #{lsn_init_forward.1} parent=5 // pred_fallthru
        _
    $region6: #{lsn_init_forward.1} parent=1 // loop_footer
      %s22 = sadd.s32 1, %s18
    $region7: #{lsn_init_forward.1} parent=1 // loop_footer_branch
      %17 = sbr.rel target = $region3
    $region8: #{lsn_init_forward.1} parent=1 // loop_exit
      _

</llo_original>
